<compile_context>
chip_gen: v7x
topology: tpu7x:2x2x1
jax: 0.10.0
libtpu: 0.0.40
codegen_flags: <defaults>
</compile_context>

<pallas_src>
import jax
import jax.numpy as jnp
from jax.experimental import pallas as pl
from jax.experimental.pallas import tpu as pltpu


def simple_cnn_kernel(wb_ref, x_ref, o_ref):
    # wb_ref: SMEM (4,) f32 -> [w_eff[0], w_eff[1], w_eff[2], b_eff]
    # x_ref : VMEM (3, TB)  -> channels on sublanes, batch on lanes
    # o_ref : VMEM (1, TB)  -> lane-dense output row
    x = x_ref[...]
    # Dropout(p=0.5): identity at inference time.
    # TODO(synk): training-mode dropout (pltpu.prng_random_bits mask) not emitted here.
    o_ref[...] = (
        x[0:1, :] * wb_ref[0]
        + x[1:2, :] * wb_ref[1]
        + x[2:3, :] * wb_ref[2]
        + wb_ref[3]
    )


def _pick_lane_tile(batch, preferred=512):
    # Tile the batch (lane) axis only when it is big enough and divides evenly;
    # otherwise use one full-array block (valid for any B, incl. B=8).
    if batch >= preferred and batch % preferred == 0:
        return preferred
    return batch


def simple_cnn_forward(x_ncw, params):
    """x_ncw: (B, 3, 1) float32 (NCW, PyTorch Conv1d layout). Returns (B, 1) float32."""
    B, Cin, L = x_ncw.shape
    assert Cin == 3 and L == 1, "flatten + Linear(32, 1) requires C=3, L=1"

    w1, b1, w2, b2, wf, bf = params

    # Collapse the affine chain (exact: no nonlinearities in the module).
    w_eff = (w1 @ w2) @ wf                    # (3, 1)
    b_eff = (b1 @ w2 + b2) @ wf + bf          # (1, 1)
    wb = jnp.concatenate([w_eff.reshape(3), b_eff.reshape(1)]).astype(jnp.float32)  # (4,)

    # Channels -> sublanes, batch -> lanes (lane-dense input and output).
    x_cb = x_ncw.reshape(B, Cin).T            # (3, B)

    tb = _pick_lane_tile(B)
    grid = (B // tb,)

    out_row = pl.pallas_call(
        simple_cnn_kernel,
        out_shape=jax.ShapeDtypeStruct((1, B), jnp.float32),
        grid=grid,
        in_specs=[
            pl.BlockSpec(memory_space=pltpu.MemorySpace.SMEM),       # wb: whole (4,) in SMEM
            pl.BlockSpec((3, tb), lambda i: (0, i)),                 # x tile
        ],
        out_specs=pl.BlockSpec((1, tb), lambda i: (0, i)),
        compiler_params=pltpu.CompilerParams(
            dimension_semantics=("parallel",),                       # megacore-shardable batch axis
        ),
    )(wb, x_cb)

    return out_row.reshape(B, 1)


def init_params(key):
    """Deterministic parameter init matching PyTorch shapes.

    conv1.weight (16,3,1) -> stored transposed/squeezed as (3,16)
    conv2.weight (32,16,1) -> (16,32)
    fc.weight    (1,32)    -> (32,1)
    Biases kept 2-D (1, C).
    """
    k1, k2, k3, k4, k5, k6 = jax.random.split(key, 6)

    def u(k, shape, fan_in):
        lim = 1.0 / jnp.sqrt(jnp.float32(fan_in))
        return jax.random.uniform(k, shape, jnp.float32, -lim, lim)

    w1 = u(k1, (3, 16), 3)
    b1 = u(k2, (1, 16), 3)
    w2 = u(k3, (16, 32), 16)
    b2 = u(k4, (1, 32), 16)
    wf = u(k5, (32, 1), 32)
    bf = u(k6, (1, 1), 32)
    return w1, b1, w2, b2, wf, bf


if __name__ == "__main__":
    key = jax.random.PRNGKey(0)
    pkey, xkey = jax.random.split(key)
    params = init_params(pkey)

    # Input consistent with the module: NCW = (batch=8, channels=3, length=1)
    B = 8
    x = jax.random.normal(xkey, (B, 3, 1), dtype=jnp.float32)

    out = simple_cnn_forward(x, params)
    out = jax.block_until_ready(out)

    # Pure-JAX reference (un-collapsed math, outside Pallas)
    w1, b1, w2, b2, wf, bf = params
    x2d = x.reshape(B, 3)
    ref = ((x2d @ w1 + b1) @ w2 + b2) @ wf + bf
    assert out.shape == (B, 1)
    assert jnp.allclose(out, ref, atol=1e-5), "mismatch vs reference"

    print("KERNEL_OK")
</pallas_src>

<mosaic_0001>
module attributes {stable_mosaic.version = 11 : i64} {
  func.func @simple_cnn_kernel(%arg0: i32, %arg1: memref<4xf32, #tpu.memory_space<smem>>, %arg2: memref<3x8xf32, #tpu.memory_space<vmem>>, %arg3: memref<1x8xf32, #tpu.memory_space<vmem>>) attributes {dimension_semantics = [#tpu.dimension_semantics<parallel>], iteration_bounds = array<i64: 1>, scalar_prefetch = 0 : i64, scratch_operands = 0 : i64, tpu.core_type = #tpu.core_type<tc>, window_params = [{transform_indices = @transform_0, window_bounds = array<i64: 4>}, {transform_indices = @transform_1, window_bounds = array<i64: 3, 8>}, {transform_indices = @transform_2, window_bounds = array<i64: 1, 8>}]} {
    %c0 = arith.constant 0 : index
    %c0_0 = arith.constant 0 : index
    %0 = vector.load %arg2[%c0, %c0_0] : memref<3x8xf32, #tpu.memory_space<vmem>>, vector<3x8xf32>
    %1 = vector.extract_strided_slice %0 {offsets = [0, 0], sizes = [1, 8], strides = [1, 1]} : vector<3x8xf32> to vector<1x8xf32>
    %c0_1 = arith.constant 0 : index
    %2 = memref.load %arg1[%c0_1] : memref<4xf32, #tpu.memory_space<smem>>
    %3 = vector.broadcast %2 : f32 to vector<1x8xf32>
    %4 = arith.mulf %1, %3 : vector<1x8xf32>
    %5 = vector.extract_strided_slice %0 {offsets = [1, 0], sizes = [1, 8], strides = [1, 1]} : vector<3x8xf32> to vector<1x8xf32>
    %c1 = arith.constant 1 : index
    %6 = memref.load %arg1[%c1] : memref<4xf32, #tpu.memory_space<smem>>
    %7 = vector.broadcast %6 : f32 to vector<1x8xf32>
    %8 = arith.mulf %5, %7 : vector<1x8xf32>
    %9 = arith.addf %4, %8 : vector<1x8xf32>
    %10 = vector.extract_strided_slice %0 {offsets = [2, 0], sizes = [1, 8], strides = [1, 1]} : vector<3x8xf32> to vector<1x8xf32>
    %c2 = arith.constant 2 : index
    %11 = memref.load %arg1[%c2] : memref<4xf32, #tpu.memory_space<smem>>
    %12 = vector.broadcast %11 : f32 to vector<1x8xf32>
    %13 = arith.mulf %10, %12 : vector<1x8xf32>
    %14 = arith.addf %9, %13 : vector<1x8xf32>
    %c3 = arith.constant 3 : index
    %15 = memref.load %arg1[%c3] : memref<4xf32, #tpu.memory_space<smem>>
    %16 = vector.broadcast %15 : f32 to vector<1x8xf32>
    %17 = arith.addf %14, %16 : vector<1x8xf32>
    %c0_2 = arith.constant 0 : index
    %c0_3 = arith.constant 0 : index
    %18 = vector.load %arg3[%c0_2, %c0_3] : memref<1x8xf32, #tpu.memory_space<vmem>>, vector<1x8xf32>
    tpu.vector_store %arg3[%c0_2, %c0_3], %17 {strides = array<i32>} : memref<1x8xf32, #tpu.memory_space<vmem>>, vector<1x8xf32>,
    return
  }
  func.func @transform_0(%arg0: i32) -> i32 {
    %c0_i32 = arith.constant 0 : i32
    %c0_i32_0 = arith.constant 0 : i32
    return %c0_i32 : i32
  }
  func.func @transform_1(%arg0: i32) -> (i32, i32) {
    %c0_i32 = arith.constant 0 : i32
    %c0_i32_0 = arith.constant 0 : i32
    return %c0_i32, %arg0 : i32, i32
  }
  func.func @transform_2(%arg0: i32) -> (i32, i32) {
    %c0_i32 = arith.constant 0 : i32
    %c0_i32_0 = arith.constant 0 : i32
    return %c0_i32, %arg0 : i32, i32
  }
}

</mosaic_0001>

<llo_original>
// kernel: tpu_custom_call.1
$region0: #{tpu_custom_call.1}
  #allocation0 [shape = 'u32[]', space=smem, size = 0x4, offset = 0x4, fixed_abs, tag = 'smem constant byte address 0x4 - core index']
  #allocation1 [shape = 'u32[144,128]{1,0:T(1,128)}', space=vmem, size = 0x12000, scoped, tag = 'internal scratch']
  %s0 = inlined_call_operand.hbm [shape: f32[4], index: 0, kind: input, shape index: {}]
  %s1 = inlined_call_operand.hbm [shape: f32[3,8], index: 1, kind: input, shape index: {}]
  %s2 = inlined_call_operand.hbm [shape: f32[1,8], index: 2, kind: output, shape index: {}]
  %s3 = sld [smem:[#allocation0]]
  $region26: #{tpu_custom_call.1} parent=0
    _
  %s5 = ssub.s32 1, %s3
  %s6 = scalar_select 0, %s5, %s3
  $region1: #{tpu_custom_call.1} parent=0
    #allocation2 [shape = 'u8[512]{0}', space=smem, size = 0x200, scoped, tag = 'input window, operand 0, single buffered']
    #allocation3 [shape = 's32[1]{0}', space=sflag, size = 0x4, scoped, tag = 'scoped memory for tpu_custom_call.1']
    #allocation4 [shape = 's32[1]{0}', space=sflag, size = 0x4, scoped, tag = 'scoped memory for tpu_custom_call.1']
    #allocation5 [shape = 's32[1]{0}', space=sflag, size = 0x4, scoped, tag = 'scoped memory for tpu_custom_call.1']
    #allocation6 [shape = 'u8[2048]{0}', space=vmem, size = 0x800, scoped, tag = 'input window, operand 1, single buffered']
    #allocation7 [shape = 'u8[512]{0}', space=vmem, size = 0x400, scoped, tag = 'output window, operand 0, single buffered']
    %7 = vsyncpa [#allocation5], 0
    %8 = vsyncpa [#allocation3], 0
    %9 = vsyncpa [#allocation4], 0
    // Predicated region
    $region2: #{tpu_custom_call.1} parent=1 // pred_check
      _
    $region3: #{tpu_custom_call.1} parent=1 // pred_check_branch
      %11 = sbr.rel (0) target = $region5
    $region4: #{tpu_custom_call.1} parent=1 // pred_region
      %s13 = ssub.s32 16, 16
      %14 = vsyncadd [#allocation5], %s13
      %17 = dma.hbm_to_smem %s0, 16, [#allocation2], [#allocation5]
    $region5: #{tpu_custom_call.1} parent=1 // pred_fallthru
      _
    // Predicated region
    $region6: #{tpu_custom_call.1} parent=1 // pred_check
      _
    $region7: #{tpu_custom_call.1} parent=1 // pred_check_branch
      %19 = sbr.rel (0) target = $region9
    $region8: #{tpu_custom_call.1} parent=1 // pred_region
      %s21 = ssub.s32 64, 64
      %22 = vsyncadd [#allocation3], %s21
      %s24 = sshll.u32 [#allocation6], 4
      %s25 = int_to_ptr.vmem [resolvable:$true] %s24
      %27 = dma.hbm_to_vmem [thread:$0]  %s1, 64, %s25, [#allocation3]
    $region9: #{tpu_custom_call.1} parent=1 // pred_fallthru
      _
    // Predicated region
    $region10: #{tpu_custom_call.1} parent=1 // pred_check
      _
    $region11: #{tpu_custom_call.1} parent=1 // pred_check_branch
      %29 = sbr.rel (0) target = $region13
    $region12: #{tpu_custom_call.1} parent=1 // pred_region
      %30 = dma.done [#allocation5], 16
    $region13: #{tpu_custom_call.1} parent=1 // pred_fallthru
      _
    // Predicated region
    $region14: #{tpu_custom_call.1} parent=1 // pred_check
      _
    $region15: #{tpu_custom_call.1} parent=1 // pred_check_branch
      %32 = sbr.rel (0) target = $region17
    $region16: #{tpu_custom_call.1} parent=1 // pred_region
      %33 = dma.done [#allocation3], 64
    $region17: #{tpu_custom_call.1} parent=1 // pred_fallthru
      _
    %34 = sfence
    %v35 = vld [vmem:[#allocation6] sm:$0x7]
    %s36 = sld [smem:[#allocation2]]
    %v37 = vstv %s36
    %v38 = vmul.f32 %v35, %v37
    %s39 = sld [smem:[#allocation2 + $0x1]]
    %v40 = vstv %s39
    %v41 = vmul.f32 %v35, %v40
    %v43 = vrot.slane %v41, 1
    %v45 = vadd.f32 %v38, %v43
    %s46 = sld [smem:[#allocation2 + $0x2]]
    %v47 = vstv %s46
    %v48 = vmul.f32 %v35, %v47
    %v50 = vrot.slane %v48, 2
    %v52 = vadd.f32 %v45, %v50
    %s53 = sld [smem:[#allocation2 + $0x3]]
    %v54 = vstv %s53
    %v55 = vadd.f32 %v52, %v54
    %vm56 = vcmask 57344
    %57 = vst.msk [vmem:[#allocation7] sm:$0x1] %vm56, %v55
    // Predicated region
    $region18: #{tpu_custom_call.1} parent=1 // pred_check
      _
    $region19: #{tpu_custom_call.1} parent=1 // pred_check_branch
      %59 = sbr.rel (0) target = $region21
    $region20: #{tpu_custom_call.1} parent=1 // pred_region
      %s61 = ssub.s32 16, 16
      %62 = vsyncadd [#allocation4], %s61
      %s64 = sshll.u32 [#allocation7], 4
      %s65 = int_to_ptr.vmem [resolvable:$true] %s64
      %67 = dma.vmem_to_hbm [thread:$0]  %s65, 16, %s2, [#allocation4]
    $region21: #{tpu_custom_call.1} parent=1 // pred_fallthru
      _
    // Predicated region
    $region22: #{tpu_custom_call.1} parent=1 // pred_check
      _
    $region23: #{tpu_custom_call.1} parent=1 // pred_check_branch
      %69 = sbr.rel (0) target = $region25
    $region24: #{tpu_custom_call.1} parent=1 // pred_region
      %70 = dma.done [#allocation4], 16
    $region25: #{tpu_custom_call.1} parent=1 // pred_fallthru
      _
    %71 = vsyncpa [#allocation3], 1
    %72 = vsyncpa [#allocation4], 1
    %73 = vsyncpa [#allocation5], 1

</llo_original>
